<compile_context>
chip_gen: v5e
topology: v5e:2x2
jax: 0.10.0
libtpu: 0.0.40
codegen_flags: <defaults>
</compile_context>

<pallas_src>
import functools

import jax
import jax.numpy as jnp
from jax.experimental import pallas as pl
from jax.experimental.pallas import tpu as pltpu

_LANE = 128
_SUBLANE = 8


def _round_up(a, b):
    return (a + b - 1) // b * b


def _pretrain_head_kernel(x_ref, w1_ref, b1_ref, w2_ref, b2_ref, o_ref, acc_ref,
                          *, inv_num_patch, compute_dtype):
    # x_ref:  [TB, PT, Dp]    (current batch/patch tile)
    # w1_ref: [Dp, Dp]  b1_ref: [1, Dp]   (VMEM-resident across grid steps)
    # w2_ref: [Dp, Dp]  b2_ref: [1, Dp]
    # o_ref:  [TB, Dp]
    # acc_ref: [TB, Dp] f32 scratch (patch-sum accumulator, persists across k)
    k = pl.program_id(1)

    @pl.when(k == 0)
    def _():
        acc_ref[...] = jnp.zeros_like(acc_ref)

    # Partial sum over this patch tile, accumulated in f32 (padded rows are zero).
    acc_ref[...] += jnp.sum(x_ref[...].astype(jnp.float32), axis=1)

    @pl.when(k == pl.num_programs(1) - 1)
    def _():
        # Mean over the true (unpadded) patch count; feed the MXU native-dtype tiles
        # with f32 accumulation.
        pooled = (acc_ref[...] * inv_num_patch).astype(compute_dtype)
        h = jnp.dot(pooled, w1_ref[...], preferred_element_type=jnp.float32)
        h = jnp.maximum(h + b1_ref[...].astype(jnp.float32), 0.0)
        y = jnp.dot(h.astype(compute_dtype), w2_ref[...],
                    preferred_element_type=jnp.float32)
        y = y + b2_ref[...].astype(jnp.float32)
        o_ref[...] = y.astype(o_ref.dtype)


def pretrain_head_constrat(x, w1, b1, w2, b2, *, tb_max=128,
                           x_tile_bytes=4 * 1024 * 1024):
    """x: [bs, num_patch, d_model] (or [bs, d_model], already pooled) -> [bs, d_model].

    w1, w2: [d_model, d_model] in (in, out) layout; b1, b2: [d_model].
    """
    # TODO(synk): PyTorch's .squeeze() drops the batch dim when bs==1 (returns
    #             [d_model]); we always return [bs, d_model].
    if x.ndim == 2:
        x = x[:, None, :]
    bs, num_patch, d_model = x.shape
    itemsize = jnp.dtype(x.dtype).itemsize

    # --- tile sizing / padding -------------------------------------------------
    d_pad = _round_up(d_model, _LANE)                      # lane-dense feature axis
    tb = min(_round_up(bs, _SUBLANE), tb_max)              # batch tile, multiple of 8
    bs_pad = _round_up(bs, tb)

    # Patch tile: largest multiple of 8 keeping one streamed x tile within the byte
    # budget (tile is double-buffered by the BlockSpec pipeline).
    pt_cap = max(_SUBLANE,
                 (x_tile_bytes // (tb * d_pad * itemsize)) // _SUBLANE * _SUBLANE)
    if num_patch <= pt_cap:
        pt = num_patch
        np_pad = num_patch
    else:
        pt = pt_cap
        np_pad = _round_up(num_patch, pt)

    x_p = x
    if (bs_pad, np_pad, d_pad) != (bs, num_patch, d_model):
        x_p = jnp.pad(x, ((0, bs_pad - bs), (0, np_pad - num_patch),
                          (0, d_pad - d_model)))

    def _pad_w(w):
        if d_pad == d_model:
            return w
        return jnp.pad(w, ((0, d_pad - d_model), (0, d_pad - d_model)))

    def _pad_b(b):
        b = b.reshape(1, d_model)
        if d_pad == d_model:
            return b
        return jnp.pad(b, ((0, 0), (0, d_pad - d_model)))

    w1_p, w2_p = _pad_w(w1), _pad_w(w2)
    b1_p, b2_p = _pad_b(b1), _pad_b(b2)

    grid = (bs_pad // tb, np_pad // pt)
    const2d = lambda i, k: (0, 0)

    kernel = functools.partial(_pretrain_head_kernel,
                               inv_num_patch=1.0 / num_patch,
                               compute_dtype=x.dtype)

    flops = 4 * bs * d_model * d_model + 2 * bs * num_patch * d_model
    bytes_accessed = (bs * num_patch * d_model + 2 * d_model * d_model
                      + 2 * d_model + bs * d_model) * itemsize

    out = pl.pallas_call(
        kernel,
        out_shape=jax.ShapeDtypeStruct((bs_pad, d_pad), x.dtype),
        grid_spec=pltpu.PrefetchScalarGridSpec(
            num_scalar_prefetch=0,
            grid=grid,
            in_specs=[
                # x is streamed per (batch tile, patch tile)
                pl.BlockSpec((tb, pt, d_pad), lambda i, k: (i, k, 0)),
                # weights / biases: constant index_map -> DMA'd once, VMEM-resident
                pl.BlockSpec((d_pad, d_pad), const2d),
                pl.BlockSpec((1, d_pad), const2d),
                pl.BlockSpec((d_pad, d_pad), const2d),
                pl.BlockSpec((1, d_pad), const2d),
            ],
            # Output block index is independent of k -> tile stays resident across the
            # reduction axis; HBM writeback happens once per batch tile.
            out_specs=pl.BlockSpec((tb, d_pad), lambda i, k: (i, 0)),
            scratch_shapes=[pltpu.VMEM((tb, d_pad), jnp.float32)],
        ),
        compiler_params=pltpu.CompilerParams(
            dimension_semantics=("parallel", "arbitrary"),
            vmem_limit_bytes=32 * 1024 * 1024,
        ),
        cost_estimate=pl.CostEstimate(
            flops=flops, transcendentals=0, bytes_accessed=bytes_accessed),
    )(x_p, w1_p, b1_p, w2_p, b2_p)

    return out[:bs, :d_model]


def _reference(x, w1, b1, w2, b2):
    pooled = jnp.mean(x.astype(jnp.float32), axis=1)
    h = jnp.maximum(pooled @ w1 + b1, 0.0)
    return h @ w2 + b2


if __name__ == "__main__":
    key = jax.random.PRNGKey(0)
    k_x, k_w1, k_b1, k_w2, k_b2, k_x2 = jax.random.split(key, 6)

    bs, num_patch, d_model = 2, 8, 32
    x = jax.random.normal(k_x, (bs, num_patch, d_model), dtype=jnp.float32)

    # Deterministic synthetic parameters (nn.Linear: weight [out,in], bias [out]);
    # weights are stored pre-transposed as [in, out].
    scale = 1.0 / jnp.sqrt(jnp.float32(d_model))
    w1 = jax.random.uniform(k_w1, (d_model, d_model), jnp.float32, -scale, scale)
    b1 = jax.random.uniform(k_b1, (d_model,), jnp.float32, -scale, scale)
    w2 = jax.random.uniform(k_w2, (d_model, d_model), jnp.float32, -scale, scale)
    b2 = jax.random.uniform(k_b2, (d_model,), jnp.float32, -scale, scale)

    out = jax.block_until_ready(pretrain_head_constrat(x, w1, b1, w2, b2))
    ref = _reference(x, w1, b1, w2, b2)
    assert out.shape == (bs, d_model), out.shape
    assert jnp.allclose(out, ref, atol=1e-5, rtol=1e-5), "mismatch vs reference (case 1)"

    # Second case exercises batch padding + multi-step (batch, patch) grid + accumulator.
    bs2, np2 = 20, 24
    x2 = jax.random.normal(k_x2, (bs2, np2, d_model), dtype=jnp.float32)
    out2 = jax.block_until_ready(
        pretrain_head_constrat(x2, w1, b1, w2, b2, tb_max=8, x_tile_bytes=8 * 1024))
    ref2 = _reference(x2, w1, b1, w2, b2)
    assert out2.shape == (bs2, d_model), out2.shape
    assert jnp.allclose(out2, ref2, atol=1e-5, rtol=1e-5), "mismatch vs reference (case 2)"

    print("KERNEL_OK")
</pallas_src>

<mosaic_0001>
module attributes {stable_mosaic.version = 11 : i64} {
  func.func @_pretrain_head_kernel(%arg0: i32, %arg1: i32, %arg2: memref<8x8x128xf32, #tpu.memory_space<vmem>>, %arg3: memref<128x128xf32, #tpu.memory_space<vmem>>, %arg4: memref<1x128xf32, #tpu.memory_space<vmem>>, %arg5: memref<128x128xf32, #tpu.memory_space<vmem>>, %arg6: memref<1x128xf32, #tpu.memory_space<vmem>>, %arg7: memref<8x128xf32, #tpu.memory_space<vmem>>, %arg8: memref<8x128xf32, #tpu.memory_space<vmem>>) attributes {dimension_semantics = [#tpu.dimension_semantics<parallel>, #tpu.dimension_semantics<arbitrary>], iteration_bounds = array<i64: 1, 1>, scalar_prefetch = 0 : i64, scratch_operands = 1 : i64, tpu.core_type = #tpu.core_type<tc>, window_params = [{transform_indices = @transform_0, window_bounds = array<i64: 8, 8, 128>}, {pipeline_mode = #tpu.pipeline_mode<synchronous>, transform_indices = @transform_1, window_bounds = array<i64: 128, 128>}, {pipeline_mode = #tpu.pipeline_mode<synchronous>, transform_indices = @transform_2, window_bounds = array<i64: 1, 128>}, {pipeline_mode = #tpu.pipeline_mode<synchronous>, transform_indices = @transform_3, window_bounds = array<i64: 128, 128>}, {pipeline_mode = #tpu.pipeline_mode<synchronous>, transform_indices = @transform_4, window_bounds = array<i64: 1, 128>}, {transform_indices = @transform_5, window_bounds = array<i64: 8, 128>}]} {
    %c0_i32 = arith.constant 0 : i32
    %0 = arith.cmpi eq, %arg1, %c0_i32 : i32
    %1 = arith.extui %0 : i1 to i32
    %c0_i32_0 = arith.constant 0 : i32
    %2 = arith.cmpi ne, %1, %c0_i32_0 : i32
    scf.if %2 {
      %cst_9 = arith.constant 0.000000e+00 : f32
      %11 = vector.broadcast %cst_9 : f32 to vector<8x128xf32>
      %c0_10 = arith.constant 0 : index
      %c0_11 = arith.constant 0 : index
      %12 = vector.load %arg8[%c0_10, %c0_11] : memref<8x128xf32, #tpu.memory_space<vmem>>, vector<8x128xf32>
      tpu.vector_store %arg8[%c0_10, %c0_11], %11 {strides = array<i32>} : memref<8x128xf32, #tpu.memory_space<vmem>>, vector<8x128xf32>,
    } else {
    }
    %c0 = arith.constant 0 : index
    %c0_1 = arith.constant 0 : index
    %3 = vector.load %arg8[%c0, %c0_1] : memref<8x128xf32, #tpu.memory_space<vmem>>, vector<8x128xf32>
    %c0_2 = arith.constant 0 : index
    %c0_3 = arith.constant 0 : index
    %c0_4 = arith.constant 0 : index
    %4 = vector.load %arg2[%c0_2, %c0_3, %c0_4] : memref<8x8x128xf32, #tpu.memory_space<vmem>>, vector<8x8x128xf32>
    %cst = arith.constant dense<0.000000e+00> : vector<8x128xf32>
    %5 = vector.multi_reduction <add>, %4, %cst [1] : vector<8x8x128xf32> to vector<8x128xf32>
    %6 = arith.addf %3, %5 : vector<8x128xf32>
    %c0_5 = arith.constant 0 : index
    %c0_6 = arith.constant 0 : index
    %7 = vector.load %arg8[%c0_5, %c0_6] : memref<8x128xf32, #tpu.memory_space<vmem>>, vector<8x128xf32>
    tpu.vector_store %arg8[%c0_5, %c0_6], %6 {strides = array<i32>} : memref<8x128xf32, #tpu.memory_space<vmem>>, vector<8x128xf32>,
    %c0_i32_7 = arith.constant 0 : i32
    %8 = arith.cmpi eq, %arg1, %c0_i32_7 : i32
    %9 = arith.extui %8 : i1 to i32
    %c0_i32_8 = arith.constant 0 : i32
    %10 = arith.cmpi ne, %9, %c0_i32_8 : i32
    scf.if %10 {
      %c0_9 = arith.constant 0 : index
      %c0_10 = arith.constant 0 : index
      %11 = vector.load %arg8[%c0_9, %c0_10] : memref<8x128xf32, #tpu.memory_space<vmem>>, vector<8x128xf32>
      %cst_11 = arith.constant 1.250000e-01 : f32
      %12 = vector.broadcast %cst_11 : f32 to vector<8x128xf32>
      %13 = arith.mulf %11, %12 : vector<8x128xf32>
      %c0_12 = arith.constant 0 : index
      %c0_13 = arith.constant 0 : index
      %14 = vector.load %arg3[%c0_12, %c0_13] : memref<128x128xf32, #tpu.memory_space<vmem>>, vector<128x128xf32>
      %cst_14 = arith.constant dense<0.000000e+00> : vector<8x128xf32>
      %15 = tpu.matmul %13, %14, %cst_14 {dimension_numbers = #tpu.dot_dimension_numbers<[1], [0], [0], [1], [0, 0, 1, 1], [], []>} : vector<8x128xf32>, vector<128x128xf32>, vector<8x128xf32> -> vector<8x128xf32>
      %c0_15 = arith.constant 0 : index
      %c0_16 = arith.constant 0 : index
      %16 = vector.load %arg4[%c0_15, %c0_16] : memref<1x128xf32, #tpu.memory_space<vmem>>, vector<1x128xf32>
      %17 = vector.broadcast %16 : vector<1x128xf32> to vector<8x128xf32>
      %18 = arith.addf %15, %17 : vector<8x128xf32>
      %cst_17 = arith.constant 0.000000e+00 : f32
      %19 = vector.broadcast %cst_17 : f32 to vector<8x128xf32>
      %20 = arith.maximumf %18, %19 : vector<8x128xf32>
      %c0_18 = arith.constant 0 : index
      %c0_19 = arith.constant 0 : index
      %21 = vector.load %arg5[%c0_18, %c0_19] : memref<128x128xf32, #tpu.memory_space<vmem>>, vector<128x128xf32>
      %cst_20 = arith.constant dense<0.000000e+00> : vector<8x128xf32>
      %22 = tpu.matmul %20, %21, %cst_20 {dimension_numbers = #tpu.dot_dimension_numbers<[1], [0], [0], [1], [0, 0, 1, 1], [], []>} : vector<8x128xf32>, vector<128x128xf32>, vector<8x128xf32> -> vector<8x128xf32>
      %c0_21 = arith.constant 0 : index
      %c0_22 = arith.constant 0 : index
      %23 = vector.load %arg6[%c0_21, %c0_22] : memref<1x128xf32, #tpu.memory_space<vmem>>, vector<1x128xf32>
      %24 = vector.broadcast %23 : vector<1x128xf32> to vector<8x128xf32>
      %25 = arith.addf %22, %24 : vector<8x128xf32>
      %c0_23 = arith.constant 0 : index
      %c0_24 = arith.constant 0 : index
      %26 = vector.load %arg7[%c0_23, %c0_24] : memref<8x128xf32, #tpu.memory_space<vmem>>, vector<8x128xf32>
      tpu.vector_store %arg7[%c0_23, %c0_24], %25 {strides = array<i32>} : memref<8x128xf32, #tpu.memory_space<vmem>>, vector<8x128xf32>,
    } else {
    }
    return
  }
  func.func @transform_0(%arg0: i32, %arg1: i32) -> (i32, i32, i32) {
    %c0_i32 = arith.constant 0 : i32
    %c0_i32_0 = arith.constant 0 : i32
    return %arg0, %arg1, %c0_i32 : i32, i32, i32
  }
  func.func @transform_1(%arg0: i32, %arg1: i32) -> (i32, i32) {
    %c0_i32 = arith.constant 0 : i32
    %c0_i32_0 = arith.constant 0 : i32
    %c0_i32_1 = arith.constant 0 : i32
    return %c0_i32, %c0_i32_0 : i32, i32
  }
  func.func @transform_2(%arg0: i32, %arg1: i32) -> (i32, i32) {
    %c0_i32 = arith.constant 0 : i32
    %c0_i32_0 = arith.constant 0 : i32
    %c0_i32_1 = arith.constant 0 : i32
    return %c0_i32, %c0_i32_0 : i32, i32
  }
  func.func @transform_3(%arg0: i32, %arg1: i32) -> (i32, i32) {
    %c0_i32 = arith.constant 0 : i32
    %c0_i32_0 = arith.constant 0 : i32
    %c0_i32_1 = arith.constant 0 : i32
    return %c0_i32, %c0_i32_0 : i32, i32
  }
  func.func @transform_4(%arg0: i32, %arg1: i32) -> (i32, i32) {
    %c0_i32 = arith.constant 0 : i32
    %c0_i32_0 = arith.constant 0 : i32
    %c0_i32_1 = arith.constant 0 : i32
    return %c0_i32, %c0_i32_0 : i32, i32
  }
  func.func @transform_5(%arg0: i32, %arg1: i32) -> (i32, i32) {
    %c0_i32 = arith.constant 0 : i32
    %c0_i32_0 = arith.constant 0 : i32
    return %arg0, %c0_i32 : i32, i32
  }
}

</mosaic_0001>

<llo_original>
// kernel: tpu_custom_call.1
$region0: #{tpu_custom_call.1}
  #allocation0 [shape = 'u32[]', space=smem, size = 0x4, offset = 0x4, fixed_abs, tag = 'smem constant byte address 0x4 - core index']
  #allocation1 [shape = 'u32[72,128]{1,0:T(1,128)}', space=vmem, size = 0x9000, scoped, tag = 'internal scratch']
  #allocation2 [shape = 'f32[8,128]{1,0:T(8,128)}', space=vmem, size = 0x1000, scoped, tag = 'scratch operand']
  %s0 = inlined_call_operand.hbm [shape: f32[8,8,128], index: 0, kind: input, shape index: {}]
  %s1 = inlined_call_operand.hbm [shape: f32[128,128], index: 1, kind: input, shape index: {}]
  %s2 = inlined_call_operand.vmem [shape: f32[1,128], index: 2, kind: input, shape index: {}]
  %s3 = inlined_call_operand.hbm [shape: f32[128,128], index: 3, kind: input, shape index: {}]
  %s4 = inlined_call_operand.vmem [shape: f32[1,128], index: 4, kind: input, shape index: {}]
  %s5 = inlined_call_operand.hbm [shape: f32[8,128], index: 5, kind: output, shape index: {}]
  %s6 = sld [smem:[#allocation0]]
  $region50: #{tpu_custom_call.1} parent=0
    _
  %s8 = ssub.s32 1, %s6
  %s9 = scalar_select 0, %s8, %s6
  $region1: #{tpu_custom_call.1} parent=0
    #allocation3 [shape = 'u8[32768]{0}', space=vmem, size = 0x8000, scoped, tag = 'input window, operand 0, single buffered']
    #allocation4 [shape = 's32[1]{0}', space=sflag, size = 0x4, scoped, tag = 'scoped memory for tpu_custom_call.1']
    #allocation5 [shape = 's32[1]{0}', space=sflag, size = 0x4, scoped, tag = 'scoped memory for tpu_custom_call.1']
    #allocation6 [shape = 'u8[65536]{0}', space=vmem, size = 0x10000, scoped, tag = 'input window, operand 1, single buffered']
    #allocation7 [shape = 's32[1]{0}', space=sflag, size = 0x4, scoped, tag = 'scoped memory for tpu_custom_call.1']
    #allocation8 [shape = 'u8[65536]{0}', space=vmem, size = 0x10000, scoped, tag = 'input window, operand 3, single buffered']
    #allocation9 [shape = 'u8[4096]{0}', space=vmem, size = 0x1000, scoped, tag = 'output window, operand 0, single buffered']
    %10 = vsyncpa [#allocation4], 0
    %11 = vsyncpa [#allocation7], 0
    %12 = vsyncpa [#allocation5], 0
    // Predicated region
    $region2: #{tpu_custom_call.1} parent=1 // pred_check
      _
    $region3: #{tpu_custom_call.1} parent=1 // pred_check_branch
      %14 = sbr.rel (0) target = $region5
    $region4: #{tpu_custom_call.1} parent=1 // pred_region
      %16 = vsyncadd [#allocation4], 0
      %s17 = sshll.u32 %s0, 4
      %s18 = int_to_ptr.hbm [resolvable:$true] %s17
      %s19 = sshll.u32 [#allocation3], 4
      %s20 = int_to_ptr.vmem [resolvable:$true] %s19
      %25 = dma.hbm_to_vmem [thread:$0]  %s18, 1024, %s20, [#allocation4], 128, 128, 8
    $region5: #{tpu_custom_call.1} parent=1 // pred_fallthru
      _
    // Predicated region
    $region6: #{tpu_custom_call.1} parent=1 // pred_check
      _
    $region7: #{tpu_custom_call.1} parent=1 // pred_check_branch
      %27 = sbr.rel (0) target = $region9
    $region8: #{tpu_custom_call.1} parent=1 // pred_region
      %29 = vsyncadd [#allocation7], 0
      %s30 = sshll.u32 %s1, 4
      %s31 = int_to_ptr.hbm [resolvable:$true] %s30
      %s32 = sshll.u32 [#allocation6], 4
      %s33 = int_to_ptr.vmem [resolvable:$true] %s32
      %38 = dma.hbm_to_vmem [thread:$0]  %s31, 2048, %s33, [#allocation7], 128, 128, 8
    $region9: #{tpu_custom_call.1} parent=1 // pred_fallthru
      _
    // Predicated region
    $region10: #{tpu_custom_call.1} parent=1 // pred_check
      _
    $region11: #{tpu_custom_call.1} parent=1 // pred_check_branch
      %40 = sbr.rel (0) target = $region13
    $region12: #{tpu_custom_call.1} parent=1 // pred_region
      _
    $region13: #{tpu_custom_call.1} parent=1 // pred_fallthru
      _
    // Predicated region
    $region14: #{tpu_custom_call.1} parent=1 // pred_check
      _
    $region15: #{tpu_custom_call.1} parent=1 // pred_check_branch
      %42 = sbr.rel (0) target = $region17
    $region16: #{tpu_custom_call.1} parent=1 // pred_region
      %44 = vsyncadd [#allocation7], 0
      %s45 = sshll.u32 %s3, 4
      %s46 = int_to_ptr.hbm [resolvable:$true] %s45
      %s47 = sshll.u32 [#allocation8], 4
      %s48 = int_to_ptr.vmem [resolvable:$true] %s47
      %53 = dma.hbm_to_vmem [thread:$0]  %s46, 2048, %s48, [#allocation7], 128, 128, 8
    $region17: #{tpu_custom_call.1} parent=1 // pred_fallthru
      _
    // Predicated region
    $region18: #{tpu_custom_call.1} parent=1 // pred_check
      _
    $region19: #{tpu_custom_call.1} parent=1 // pred_check_branch
      %55 = sbr.rel (0) target = $region21
    $region20: #{tpu_custom_call.1} parent=1 // pred_region
      _
    $region21: #{tpu_custom_call.1} parent=1 // pred_fallthru
      _
    // Predicated region
    $region22: #{tpu_custom_call.1} parent=1 // pred_check
      _
    $region23: #{tpu_custom_call.1} parent=1 // pred_check_branch
      %57 = sbr.rel (0) target = $region25
    $region24: #{tpu_custom_call.1} parent=1 // pred_region
      %59 = dma.done [#allocation4], 1024
    $region25: #{tpu_custom_call.1} parent=1 // pred_fallthru
      _
    // Predicated region
    $region26: #{tpu_custom_call.1} parent=1 // pred_check
      _
    $region27: #{tpu_custom_call.1} parent=1 // pred_check_branch
      %61 = sbr.rel (0) target = $region29
    $region28: #{tpu_custom_call.1} parent=1 // pred_region
      %63 = dma.done [#allocation7], 2048
    $region29: #{tpu_custom_call.1} parent=1 // pred_fallthru
      _
    // Predicated region
    $region30: #{tpu_custom_call.1} parent=1 // pred_check
      _
    $region31: #{tpu_custom_call.1} parent=1 // pred_check_branch
      %65 = sbr.rel (0) target = $region33
    $region32: #{tpu_custom_call.1} parent=1 // pred_region
      %67 = dma.done [#allocation7], 2048
    $region33: #{tpu_custom_call.1} parent=1 // pred_fallthru
      _
    %p68 = scmp.eq.s32.totalorder 0, 0
    // Predicated region
    $region34: #{tpu_custom_call.1} parent=1 // pred_check
      %p69 = pneg %p68
    $region35: #{tpu_custom_call.1} parent=1 // pred_check_branch
      %71 = sbr.rel (%p69) target = $region37
    $region36: #{tpu_custom_call.1} parent=1 // pred_region
      %72 = vst [vmem:[#allocation2] sm:$0xff] 0.0
    $region37: #{tpu_custom_call.1} parent=1 // pred_fallthru
      _
    %v73 = vld [vmem:[#allocation2] sm:$0xff]
    %v74 = vld [vmem:[#allocation3] sm:$0xff]
    %v75 = vld [vmem:[#allocation3 + $0x8] sm:$0xff]
    %v76 = vld [vmem:[#allocation3 + $0x10] sm:$0xff]
    %v77 = vld [vmem:[#allocation3 + $0x18] sm:$0xff]
    %v78 = vld [vmem:[#allocation3 + $0x20] sm:$0xff]
    %v79 = vld [vmem:[#allocation3 + $0x28] sm:$0xff]
    %v80 = vld [vmem:[#allocation3 + $0x30] sm:$0xff]
    %v81 = vld [vmem:[#allocation3 + $0x38] sm:$0xff]
    %v82 = vrot.slane %v74, 4
    %v83 = vadd.f32 %v74, %v82
    %v84 = vrot.slane %v83, 2
    %v85 = vadd.f32 %v83, %v84
    %v86 = vrot.slane %v85, 1
    %v87 = vadd.f32 %v85, %v86
    %v88 = vrot.slane %v75, 4
    %v89 = vadd.f32 %v75, %v88
    %v90 = vrot.slane %v89, 2
    %v91 = vadd.f32 %v89, %v90
    %v92 = vrot.slane %v91, 1
    %v93 = vadd.f32 %v91, %v92
    %v94 = vrot.slane %v76, 4
    %v95 = vadd.f32 %v76, %v94
    %v96 = vrot.slane %v95, 2
    %v97 = vadd.f32 %v95, %v96
    %v98 = vrot.slane %v97, 1
    %v99 = vadd.f32 %v97, %v98
    %v100 = vrot.slane %v77, 4
    %v101 = vadd.f32 %v77, %v100
    %v102 = vrot.slane %v101, 2
    %v103 = vadd.f32 %v101, %v102
    %v104 = vrot.slane %v103, 1
    %v105 = vadd.f32 %v103, %v104
    %v106 = vrot.slane %v78, 4
    %v107 = vadd.f32 %v78, %v106
    %v108 = vrot.slane %v107, 2
    %v109 = vadd.f32 %v107, %v108
    %v110 = vrot.slane %v109, 1
    %v111 = vadd.f32 %v109, %v110
    %v112 = vrot.slane %v79, 4
    %v113 = vadd.f32 %v79, %v112
    %v114 = vrot.slane %v113, 2
    %v115 = vadd.f32 %v113, %v114
    %v116 = vrot.slane %v115, 1
    %v117 = vadd.f32 %v115, %v116
    %v118 = vrot.slane %v80, 4
    %v119 = vadd.f32 %v80, %v118
    %v120 = vrot.slane %v119, 2
    %v121 = vadd.f32 %v119, %v120
    %v122 = vrot.slane %v121, 1
    %v123 = vadd.f32 %v121, %v122
    %v124 = vrot.slane %v81, 4
    %v125 = vadd.f32 %v81, %v124
    %v126 = vrot.slane %v125, 2
    %v127 = vadd.f32 %v125, %v126
    %v128 = vrot.slane %v127, 1
    %v129 = vadd.f32 %v127, %v128
    %vm138 = vcmask 1041409
    %v139 = vsel %vm138, %v93, %v87
    %vm140 = vcmask 1042434
    %v141 = vsel %vm140, %v99, %v139
    %vm142 = vcmask 1043459
    %v143 = vsel %vm142, %v105, %v141
    %vm144 = vcmask 1044484
    %v145 = vsel %vm144, %v111, %v143
    %vm146 = vcmask 1045509
    %v147 = vsel %vm146, %v117, %v145
    %vm148 = vcmask 1046534
    %v149 = vsel %vm148, %v123, %v147
    %vm150 = vcmask 1047559
    %v151 = vsel %vm150, %v129, %v149
    %v153 = vadd.f32 %v73, %v151
    %154 = vst [vmem:[#allocation2] sm:$0xff] %v153
    // Predicated region
    $region38: #{tpu_custom_call.1} parent=1 // pred_check
      %p155 = pneg %p68
    $region39: #{tpu_custom_call.1} parent=1 // pred_check_branch
      %157 = sbr.rel (%p155) target = $region41
    $region40: #{tpu_custom_call.1} parent=1 // pred_region
      %v158 = vld [vmem:[#allocation2] sm:$0xff]
      %v159 = vmul.f32 %v158, 0.125
      %v160 = vld [vmem:[#allocation6] sm:$0xff]
      %v161 = vld [vmem:[#allocation6 + $0x8] sm:$0xff]
      %v162 = vld [vmem:[#allocation6 + $0x10] sm:$0xff]
      %v163 = vld [vmem:[#allocation6 + $0x18] sm:$0xff]
      %v164 = vld [vmem:[#allocation6 + $0x20] sm:$0xff]
      %v165 = vld [vmem:[#allocation6 + $0x28] sm:$0xff]
      %v166 = vld [vmem:[#allocation6 + $0x30] sm:$0xff]
      %v167 = vld [vmem:[#allocation6 + $0x38] sm:$0xff]
      %v168 = vld [vmem:[#allocation6 + $0x40] sm:$0xff]
      %v169 = vld [vmem:[#allocation6 + $0x48] sm:$0xff]
      %v170 = vld [vmem:[#allocation6 + $0x50] sm:$0xff]
      %v171 = vld [vmem:[#allocation6 + $0x58] sm:$0xff]
      %v172 = vld [vmem:[#allocation6 + $0x60] sm:$0xff]
      %v173 = vld [vmem:[#allocation6 + $0x68] sm:$0xff]
      %v174 = vld [vmem:[#allocation6 + $0x70] sm:$0xff]
      %v175 = vld [vmem:[#allocation6 + $0x78] sm:$0xff]
      %v176 = vld [vmem:[%s2] sm:$0x1]
      %v178 = vperm.slane %v176, 0
      %180 = vmatpush.msra.mxu0 %v175
      %181 = vmatpush.msra.mxu0 %v174
      %182 = vmatpush.msra.mxu0 %v173
      %183 = vmatpush.msra.mxu0 %v172
      %184 = vmatpush.msra.mxu0 %v171
      %185 = vmatpush.msra.mxu0 %v170
      %186 = vmatpush.msra.mxu0 %v169
      %187 = vmatpush.msra.mxu0 %v168
      %188 = vmatpush.msra.mxu0 %v167
      %189 = vmatpush.msra.mxu0 %v166
      %190 = vmatpush.msra.mxu0 %v165
      %191 = vmatpush.msra.mxu0 %v164
      %192 = vmatpush.msra.mxu0 %v163
      %193 = vmatpush.msra.mxu0 %v162
      %194 = vmatpush.msra.mxu0 %v161
      %195 = vmatpush.msra.mxu0 %v160
      %196 = vmatmul.f32.gmra.mxu0 %v159
      %v197 = vpop.f32.mrf.mxu0
      %v198 = vadd.f32 %v178, %v197
      %199 = vdwg.mxu0
      %v200 = vmax.f32 %v198, 0.0
      %v201 = vld [vmem:[#allocation8] sm:$0xff]
      %v202 = vld [vmem:[#allocation8 + $0x8] sm:$0xff]
      %v203 = vld [vmem:[#allocation8 + $0x10] sm:$0xff]
      %v204 = vld [vmem:[#allocation8 + $0x18] sm:$0xff]
      %v205 = vld [vmem:[#allocation8 + $0x20] sm:$0xff]
      %v206 = vld [vmem:[#allocation8 + $0x28] sm:$0xff]
      %v207 = vld [vmem:[#allocation8 + $0x30] sm:$0xff]
      %v208 = vld [vmem:[#allocation8 + $0x38] sm:$0xff]
      %v209 = vld [vmem:[#allocation8 + $0x40] sm:$0xff]
      %v210 = vld [vmem:[#allocation8 + $0x48] sm:$0xff]
      %v211 = vld [vmem:[#allocation8 + $0x50] sm:$0xff]
      %v212 = vld [vmem:[#allocation8 + $0x58] sm:$0xff]
      %v213 = vld [vmem:[#allocation8 + $0x60] sm:$0xff]
      %v214 = vld [vmem:[#allocation8 + $0x68] sm:$0xff]
      %v215 = vld [vmem:[#allocation8 + $0x70] sm:$0xff]
      %v216 = vld [vmem:[#allocation8 + $0x78] sm:$0xff]
      %v217 = vld [vmem:[%s4] sm:$0x1]
      %v219 = vperm.slane %v217, 0
      %221 = vmatpush.msra.mxu0 %v216
      %222 = vmatpush.msra.mxu0 %v215
      %223 = vmatpush.msra.mxu0 %v214
      %224 = vmatpush.msra.mxu0 %v213
      %225 = vmatpush.msra.mxu0 %v212
      %226 = vmatpush.msra.mxu0 %v211
      %227 = vmatpush.msra.mxu0 %v210
      %228 = vmatpush.msra.mxu0 %v209
      %229 = vmatpush.msra.mxu0 %v208
      %230 = vmatpush.msra.mxu0 %v207
      %231 = vmatpush.msra.mxu0 %v206
      %232 = vmatpush.msra.mxu0 %v205
      %233 = vmatpush.msra.mxu0 %v204
      %234 = vmatpush.msra.mxu0 %v203
      %235 = vmatpush.msra.mxu0 %v202
      %236 = vmatpush.msra.mxu0 %v201
      %237 = vmatmul.f32.gmra.mxu0 %v200
      %v238 = vpop.f32.mrf.mxu0
      %v239 = vadd.f32 %v219, %v238
      %240 = vdwg.mxu0
      %241 = vst [vmem:[#allocation9] sm:$0xff] %v239
    $region41: #{tpu_custom_call.1} parent=1 // pred_fallthru
      _
    // Predicated region
    $region42: #{tpu_custom_call.1} parent=1 // pred_check
      _
    $region43: #{tpu_custom_call.1} parent=1 // pred_check_branch
      %243 = sbr.rel (0) target = $region45
    $region44: #{tpu_custom_call.1} parent=1 // pred_region
      %245 = vsyncadd [#allocation5], 0
      %s247 = sshll.u32 [#allocation9], 4
      %s248 = int_to_ptr.vmem [resolvable:$true] %s247
      %s249 = sshll.u32 %s5, 4
      %s250 = int_to_ptr.hbm [resolvable:$true] %s249
      %252 = dma.vmem_to_hbm [thread:$0]  %s248, 128, %s250, [#allocation5]
    $region45: #{tpu_custom_call.1} parent=1 // pred_fallthru
      _
    // Predicated region
    $region46: #{tpu_custom_call.1} parent=1 // pred_check
      _
    $region47: #{tpu_custom_call.1} parent=1 // pred_check_branch
      %254 = sbr.rel (0) target = $region49
    $region48: #{tpu_custom_call.1} parent=1 // pred_region
      %256 = dma.done [#allocation5], 128
    $region49: #{tpu_custom_call.1} parent=1 // pred_fallthru
      _
    %257 = vsyncpa [#allocation4], 1
    %258 = vsyncpa [#allocation7], 1
    %259 = vsyncpa [#allocation5], 1

</llo_original>
